<compile_context>
chip_gen: v7x
topology: tpu7x:2x2x1
jax: 0.10.0
libtpu: 0.0.40
codegen_flags: <defaults>
</compile_context>

<pallas_src>
import jax
import jax.numpy as jnp
from jax.experimental import pallas as pl
from jax.experimental.pallas import tpu as pltpu


def _round_up(n, m):
    return ((n + m - 1) // m) * m


def annc_kernel(x_ref, w1_ref, b1_ref, w2_ref, b2_ref, w3d_ref, b3d_ref, o_ref):
    x = x_ref[...]

    # fc1 -> (dropout: identity) -> tanh
    h1 = jnp.tanh(
        jnp.dot(x, w1_ref[...], preferred_element_type=jnp.float32) + b1_ref[...])

    # fc2 -> (dropout: identity) -> tanh
    h2 = jnp.tanh(
        jnp.dot(h1, w2_ref[...], preferred_element_type=jnp.float32) + b2_ref[...])

    # Output layer reduced to the single logit difference d = logit1 - logit0;
    # bias difference comes in as an SMEM scalar.
    d = jnp.dot(h2, w3d_ref[...], preferred_element_type=jnp.float32) + b3d_ref[0]

    # 2-class softmax, closed form, full relative precision on both classes:
    #   p1 = 1/(1+exp(-d)),  p0 = 1/(1+exp(+d))   (== softmax([l0, l1]))
    p1 = 1.0 / (1.0 + jnp.exp(-d))   # (TB, 1)
    p0 = 1.0 / (1.0 + jnp.exp(d))    # (TB, 1)

    # Assemble the (TB, 2) tile: lane 0 = p0, lane 1 = p1.  Single full store.
    col = jax.lax.broadcasted_iota(jnp.int32, o_ref.shape, dimension=1)
    o_ref[...] = jnp.where(col == 0, p0, p1).astype(o_ref.dtype)


def annc_forward(x, params, *, tb=4096):
    """Forward pass of ANNC. Returns (B, 2) softmax probabilities."""
    w1, b1, w2, b2, w3, b3 = params
    B, F = x.shape
    F2 = w2.shape[1]

    # 2-class softmax only needs the logit difference; fold w3/b3 accordingly
    # (exact re-parameterization of the same forward pass).
    w3d = w3[:, 1:2] - w3[:, 0:1]               # (F2, 1)
    b3d = (b3[:, 1] - b3[:, 0]).reshape((1,))   # (1,) scalar -> SMEM

    # Batch tile: multiple of 8 (or the full batch when B <= 8), capped so the
    # grid has >= 2 steps when B > 8 (both v7x TensorCores get work).
    if B <= 8:
        TB = B
    else:
        TB = max(8, (min(tb, B) // 8) * 8)
        TB = min(TB, _round_up(pl.cdiv(B, 2), 8))
    grid = (pl.cdiv(B, TB),)

    # Constant block index -> weights stay resident in VMEM across grid steps.
    def resident(a):
        return pl.BlockSpec(a.shape, lambda i: (0,) * a.ndim)

    cost = pl.CostEstimate(
        flops=2 * B * (F * F + F * F2 + F2),
        transcendentals=B * (F + F2 + 2),            # tanh, tanh, 2x exp
        bytes_accessed=4 * (x.size + B * 2 + w1.size + b1.size
                            + w2.size + b2.size + w3d.size + b3d.size),
    )

    out = pl.pallas_call(
        annc_kernel,
        out_shape=jax.ShapeDtypeStruct((B, 2), jnp.float32),
        grid=grid,
        in_specs=[
            pl.BlockSpec((TB, F), lambda i: (i, 0)),   # streamed activations
            resident(w1), resident(b1),
            resident(w2), resident(b2),
            resident(w3d),
            pl.BlockSpec(memory_space=pltpu.MemorySpace.SMEM),   # b3d scalar
        ],
        # Last block dim (2) equals the full array dim -> legal, and output
        # HBM writeback is just 8 B/sample instead of 512 B/sample.
        out_specs=pl.BlockSpec((TB, 2), lambda i: (i, 0)),
        compiler_params=pltpu.CompilerParams(
            dimension_semantics=("parallel",),         # shard tiles across TCs
            vmem_limit_bytes=32 * 1024 * 1024,         # headroom on v5e/v6e/v7x
        ),
        cost_estimate=cost,
    )(x, w1, b1, w2, b2, w3d, b3d)

    return out


def init_params(key, feature_size):
    """Deterministic parameter init mirroring the PyTorch module's shapes.

    PyTorch nn.Linear stores weight as [out, in]; we store the transpose
    [in, out] so the kernel computes x @ W + b directly.
    """
    f = feature_size
    f2 = feature_size // 2
    k1, k2, k3, kb1, kb2, kb3 = jax.random.split(key, 6)

    # fc1: xavier_normal_
    std1 = (2.0 / (f + f)) ** 0.5
    w1 = jax.random.normal(k1, (f, f), jnp.float32) * std1
    b1 = jax.random.uniform(kb1, (1, f), jnp.float32,
                            minval=-(1.0 / f) ** 0.5, maxval=(1.0 / f) ** 0.5)

    # fc2: xavier_uniform_
    lim2 = (6.0 / (f + f2)) ** 0.5
    w2 = jax.random.uniform(k2, (f, f2), jnp.float32, minval=-lim2, maxval=lim2)
    b2 = jax.random.uniform(kb2, (1, f2), jnp.float32,
                            minval=-(1.0 / f) ** 0.5, maxval=(1.0 / f) ** 0.5)

    # output: PyTorch default (kaiming-uniform-ish bound)
    lim3 = (1.0 / f2) ** 0.5
    w3 = jax.random.uniform(k3, (f2, 2), jnp.float32, minval=-lim3, maxval=lim3)
    b3 = jax.random.uniform(kb3, (1, 2), jnp.float32, minval=-lim3, maxval=lim3)

    return (w1, b1, w2, b2, w3, b3)


def annc_reference(x, params):
    """Pure-JAX reference for correctness check."""
    w1, b1, w2, b2, w3, b3 = params
    h1 = jnp.tanh(x @ w1 + b1)
    h2 = jnp.tanh(h1 @ w2 + b2)
    logits = h2 @ w3 + b3
    return jax.nn.softmax(logits, axis=1)


if __name__ == "__main__":
    feature_size = 32
    batch = 8

    key = jax.random.PRNGKey(0)
    kx, kp = jax.random.split(key)
    x = jax.random.normal(kx, (batch, feature_size), jnp.float32)
    params = init_params(kp, feature_size)

    out = annc_forward(x, params)
    out = jax.block_until_ready(out)

    ref = annc_reference(x, params)
    assert out.shape == (batch, 2)
    assert jnp.allclose(out, ref, atol=1e-5, rtol=1e-5), (out, ref)
    # softmax rows sum to 1
    assert jnp.allclose(jnp.sum(out, axis=1), 1.0, atol=1e-5)

    print("KERNEL_OK")
</pallas_src>

<mosaic_0001>
module attributes {stable_mosaic.version = 11 : i64} {
  func.func @annc_kernel(%arg0: i32, %arg1: memref<8x32xf32, #tpu.memory_space<vmem>>, %arg2: memref<32x32xf32, #tpu.memory_space<vmem>>, %arg3: memref<1x32xf32, #tpu.memory_space<vmem>>, %arg4: memref<32x16xf32, #tpu.memory_space<vmem>>, %arg5: memref<1x16xf32, #tpu.memory_space<vmem>>, %arg6: memref<16x1xf32, #tpu.memory_space<vmem>>, %arg7: memref<1xf32, #tpu.memory_space<smem>>, %arg8: memref<8x2xf32, #tpu.memory_space<vmem>>) attributes {dimension_semantics = [#tpu.dimension_semantics<parallel>], iteration_bounds = array<i64: 1>, scalar_prefetch = 0 : i64, scratch_operands = 0 : i64, tpu.core_type = #tpu.core_type<tc>, window_params = [{transform_indices = @transform_0, window_bounds = array<i64: 8, 32>}, {pipeline_mode = #tpu.pipeline_mode<synchronous>, transform_indices = @transform_1, window_bounds = array<i64: 32, 32>}, {pipeline_mode = #tpu.pipeline_mode<synchronous>, transform_indices = @transform_2, window_bounds = array<i64: 1, 32>}, {pipeline_mode = #tpu.pipeline_mode<synchronous>, transform_indices = @transform_3, window_bounds = array<i64: 32, 16>}, {pipeline_mode = #tpu.pipeline_mode<synchronous>, transform_indices = @transform_4, window_bounds = array<i64: 1, 16>}, {pipeline_mode = #tpu.pipeline_mode<synchronous>, transform_indices = @transform_5, window_bounds = array<i64: 16, 1>}, {transform_indices = @transform_6, window_bounds = array<i64: 1>}, {transform_indices = @transform_7, window_bounds = array<i64: 8, 2>}]} {
    %c0 = arith.constant 0 : index
    %c0_0 = arith.constant 0 : index
    %0 = vector.load %arg1[%c0, %c0_0] : memref<8x32xf32, #tpu.memory_space<vmem>>, vector<8x32xf32>
    %c0_1 = arith.constant 0 : index
    %c0_2 = arith.constant 0 : index
    %1 = vector.load %arg2[%c0_1, %c0_2] : memref<32x32xf32, #tpu.memory_space<vmem>>, vector<32x32xf32>
    %cst = arith.constant dense<0.000000e+00> : vector<8x32xf32>
    %2 = tpu.matmul %0, %1, %cst {dimension_numbers = #tpu.dot_dimension_numbers<[1], [0], [0], [1], [0, 0, 1, 1], [], []>} : vector<8x32xf32>, vector<32x32xf32>, vector<8x32xf32> -> vector<8x32xf32>
    %c0_3 = arith.constant 0 : index
    %c0_4 = arith.constant 0 : index
    %3 = vector.load %arg3[%c0_3, %c0_4] : memref<1x32xf32, #tpu.memory_space<vmem>>, vector<1x32xf32>
    %4 = vector.broadcast %3 : vector<1x32xf32> to vector<8x32xf32>
    %5 = arith.addf %2, %4 : vector<8x32xf32>
    %6 = math.tanh %5 : vector<8x32xf32>
    %c0_5 = arith.constant 0 : index
    %c0_6 = arith.constant 0 : index
    %7 = vector.load %arg4[%c0_5, %c0_6] : memref<32x16xf32, #tpu.memory_space<vmem>>, vector<32x16xf32>
    %cst_7 = arith.constant dense<0.000000e+00> : vector<8x16xf32>
    %8 = tpu.matmul %6, %7, %cst_7 {dimension_numbers = #tpu.dot_dimension_numbers<[1], [0], [0], [1], [0, 0, 1, 1], [], []>} : vector<8x32xf32>, vector<32x16xf32>, vector<8x16xf32> -> vector<8x16xf32>
    %c0_8 = arith.constant 0 : index
    %c0_9 = arith.constant 0 : index
    %9 = vector.load %arg5[%c0_8, %c0_9] : memref<1x16xf32, #tpu.memory_space<vmem>>, vector<1x16xf32>
    %10 = vector.broadcast %9 : vector<1x16xf32> to vector<8x16xf32>
    %11 = arith.addf %8, %10 : vector<8x16xf32>
    %12 = math.tanh %11 : vector<8x16xf32>
    %c0_10 = arith.constant 0 : index
    %c0_11 = arith.constant 0 : index
    %13 = vector.load %arg6[%c0_10, %c0_11] : memref<16x1xf32, #tpu.memory_space<vmem>>, vector<16x1xf32>
    %cst_12 = arith.constant dense<0.000000e+00> : vector<8x1xf32>
    %14 = tpu.matmul %12, %13, %cst_12 {dimension_numbers = #tpu.dot_dimension_numbers<[1], [0], [0], [1], [0, 0, 1, 1], [], []>} : vector<8x16xf32>, vector<16x1xf32>, vector<8x1xf32> -> vector<8x1xf32>
    %c0_13 = arith.constant 0 : index
    %15 = memref.load %arg7[%c0_13] : memref<1xf32, #tpu.memory_space<smem>>
    %16 = vector.broadcast %15 : f32 to vector<8x1xf32>
    %17 = arith.addf %14, %16 : vector<8x1xf32>
    %cst_14 = arith.constant 0.000000e+00 : f32
    %18 = vector.broadcast %cst_14 : f32 to vector<8x1xf32>
    %19 = arith.subf %18, %17 : vector<8x1xf32>
    %20 = math.exp %19 : vector<8x1xf32>
    %cst_15 = arith.constant 1.000000e+00 : f32
    %21 = vector.broadcast %cst_15 : f32 to vector<8x1xf32>
    %22 = arith.addf %21, %20 : vector<8x1xf32>
    %cst_16 = arith.constant 1.000000e+00 : f32
    %23 = vector.broadcast %cst_16 : f32 to vector<8x1xf32>
    %24 = arith.divf %23, %22 : vector<8x1xf32>
    %25 = math.exp %17 : vector<8x1xf32>
    %cst_17 = arith.constant 1.000000e+00 : f32
    %26 = vector.broadcast %cst_17 : f32 to vector<8x1xf32>
    %27 = arith.addf %26, %25 : vector<8x1xf32>
    %cst_18 = arith.constant 1.000000e+00 : f32
    %28 = vector.broadcast %cst_18 : f32 to vector<8x1xf32>
    %29 = arith.divf %28, %27 : vector<8x1xf32>
    %30 = tpu.iota {dimensions = array<i32: 1>} : vector<8x2xi32>
    %c0_i32 = arith.constant 0 : i32
    %31 = vector.broadcast %c0_i32 : i32 to vector<8x2xi32>
    %32 = arith.cmpi eq, %30, %31 : vector<8x2xi32>
    %33 = vector.shape_cast %29 : vector<8x1xf32> to vector<8x1xf32>
    %34 = vector.broadcast %33 : vector<8x1xf32> to vector<8x2xf32>
    %35 = vector.shape_cast %24 : vector<8x1xf32> to vector<8x1xf32>
    %36 = vector.broadcast %35 : vector<8x1xf32> to vector<8x2xf32>
    %37 = arith.select %32, %34, %36 : vector<8x2xi1>, vector<8x2xf32>
    %c0_19 = arith.constant 0 : index
    %c0_20 = arith.constant 0 : index
    %38 = vector.load %arg8[%c0_19, %c0_20] : memref<8x2xf32, #tpu.memory_space<vmem>>, vector<8x2xf32>
    tpu.vector_store %arg8[%c0_19, %c0_20], %37 {strides = array<i32>} : memref<8x2xf32, #tpu.memory_space<vmem>>, vector<8x2xf32>,
    return
  }
  func.func @transform_0(%arg0: i32) -> (i32, i32) {
    %c0_i32 = arith.constant 0 : i32
    %c0_i32_0 = arith.constant 0 : i32
    return %arg0, %c0_i32 : i32, i32
  }
  func.func @transform_1(%arg0: i32) -> (i32, i32) {
    %c0_i32 = arith.constant 0 : i32
    %c0_i32_0 = arith.constant 0 : i32
    %c0_i32_1 = arith.constant 0 : i32
    return %c0_i32, %c0_i32_0 : i32, i32
  }
  func.func @transform_2(%arg0: i32) -> (i32, i32) {
    %c0_i32 = arith.constant 0 : i32
    %c0_i32_0 = arith.constant 0 : i32
    %c0_i32_1 = arith.constant 0 : i32
    return %c0_i32, %c0_i32_0 : i32, i32
  }
  func.func @transform_3(%arg0: i32) -> (i32, i32) {
    %c0_i32 = arith.constant 0 : i32
    %c0_i32_0 = arith.constant 0 : i32
    %c0_i32_1 = arith.constant 0 : i32
    return %c0_i32, %c0_i32_0 : i32, i32
  }
  func.func @transform_4(%arg0: i32) -> (i32, i32) {
    %c0_i32 = arith.constant 0 : i32
    %c0_i32_0 = arith.constant 0 : i32
    %c0_i32_1 = arith.constant 0 : i32
    return %c0_i32, %c0_i32_0 : i32, i32
  }
  func.func @transform_5(%arg0: i32) -> (i32, i32) {
    %c0_i32 = arith.constant 0 : i32
    %c0_i32_0 = arith.constant 0 : i32
    %c0_i32_1 = arith.constant 0 : i32
    return %c0_i32, %c0_i32_0 : i32, i32
  }
  func.func @transform_6(%arg0: i32) -> i32 {
    %c0_i32 = arith.constant 0 : i32
    %c0_i32_0 = arith.constant 0 : i32
    return %c0_i32 : i32
  }
  func.func @transform_7(%arg0: i32) -> (i32, i32) {
    %c0_i32 = arith.constant 0 : i32
    %c0_i32_0 = arith.constant 0 : i32
    return %arg0, %c0_i32 : i32, i32
  }
}

</mosaic_0001>

<llo_original>
// kernel: tpu_custom_call.1
$region0: #{tpu_custom_call.1}
  #allocation0 [shape = 'u32[]', space=smem, size = 0x4, offset = 0x4, fixed_abs, tag = 'smem constant byte address 0x4 - core index']
  #allocation1 [shape = 'u32[144,128]{1,0:T(1,128)}', space=vmem, size = 0x12000, scoped, tag = 'internal scratch']
  #allocation2 [shape = 'f32[1]{0:T(128)S(6)}', space=smem, size = 0x200, scoped, tag = 'scoped memory for tpu_custom_call.1']
  %s0 = inlined_call_operand.vmem [shape: f32[8,32], index: 0, kind: input, shape index: {}]
  %s1 = inlined_call_operand.vmem [shape: f32[32,32], index: 1, kind: input, shape index: {}]
  %s2 = inlined_call_operand.vmem [shape: f32[1,32], index: 2, kind: input, shape index: {}]
  %s3 = inlined_call_operand.vmem [shape: f32[32,16], index: 3, kind: input, shape index: {}]
  %s4 = inlined_call_operand.vmem [shape: f32[1,16], index: 4, kind: input, shape index: {}]
  %s5 = inlined_call_operand.vmem [shape: f32[16,1], index: 5, kind: input, shape index: {}]
  %s6 = inlined_call_operand.<no memory space> [shape: f32[1], index: 6, kind: input, shape index: {}]
  %s7 = inlined_call_operand.vmem [shape: f32[8,2], index: 7, kind: output, shape index: {}]
  %s8 = sld [smem:[#allocation0]]
  $region38: #{tpu_custom_call.1} parent=0
    _
  %s10 = ssub.s32 1, %s8
  %s11 = scalar_select 0, %s10, %s8
  %12 = sst [smem:[#allocation2]] %s6
  // Predicated region
  $region2: #{tpu_custom_call.1} parent=0 // pred_check
    _
  $region3: #{tpu_custom_call.1} parent=0 // pred_check_branch
    %14 = sbr.rel (0) target = $region5
  $region4: #{tpu_custom_call.1} parent=0 // pred_region
    _
  $region5: #{tpu_custom_call.1} parent=0 // pred_fallthru
    _
  // Predicated region
  $region6: #{tpu_custom_call.1} parent=0 // pred_check
    _
  $region7: #{tpu_custom_call.1} parent=0 // pred_check_branch
    %16 = sbr.rel (0) target = $region9
  $region8: #{tpu_custom_call.1} parent=0 // pred_region
    _
  $region9: #{tpu_custom_call.1} parent=0 // pred_fallthru
    _
  // Predicated region
  $region10: #{tpu_custom_call.1} parent=0 // pred_check
    _
  $region11: #{tpu_custom_call.1} parent=0 // pred_check_branch
    %18 = sbr.rel (0) target = $region13
  $region12: #{tpu_custom_call.1} parent=0 // pred_region
    _
  $region13: #{tpu_custom_call.1} parent=0 // pred_fallthru
    _
  // Predicated region
  $region14: #{tpu_custom_call.1} parent=0 // pred_check
    _
  $region15: #{tpu_custom_call.1} parent=0 // pred_check_branch
    %20 = sbr.rel (0) target = $region17
  $region16: #{tpu_custom_call.1} parent=0 // pred_region
    _
  $region17: #{tpu_custom_call.1} parent=0 // pred_fallthru
    _
  // Predicated region
  $region18: #{tpu_custom_call.1} parent=0 // pred_check
    _
  $region19: #{tpu_custom_call.1} parent=0 // pred_check_branch
    %22 = sbr.rel (0) target = $region21
  $region20: #{tpu_custom_call.1} parent=0 // pred_region
    _
  $region21: #{tpu_custom_call.1} parent=0 // pred_fallthru
    _
  // Predicated region
  $region22: #{tpu_custom_call.1} parent=0 // pred_check
    _
  $region23: #{tpu_custom_call.1} parent=0 // pred_check_branch
    %24 = sbr.rel (0) target = $region25
  $region24: #{tpu_custom_call.1} parent=0 // pred_region
    _
  $region25: #{tpu_custom_call.1} parent=0 // pred_fallthru
    _
  // Predicated region
  $region26: #{tpu_custom_call.1} parent=0 // pred_check
    _
  $region27: #{tpu_custom_call.1} parent=0 // pred_check_branch
    %26 = sbr.rel (0) target = $region29
  $region28: #{tpu_custom_call.1} parent=0 // pred_region
    _
  $region29: #{tpu_custom_call.1} parent=0 // pred_fallthru
    _
  %v27 = vld [vmem:[%s0] sm:$0xff]
  %v28 = vld [vmem:[%s1] sm:$0xff]
  %v29 = vld [vmem:[%s1 + $0x8] sm:$0xff]
  %v30 = vld [vmem:[%s1 + $0x10] sm:$0xff]
  %v31 = vld [vmem:[%s1 + $0x18] sm:$0xff]
  %v32 = vld [vmem:[%s2] sm:$0x1]
  %v34 = vlaneseq
  %v35 = vshrl.u32 %v34, 7
  %v36 = vsub.s32 0, %v35
  %v37 = vrot.slane %v32, %v36
  %vm39 = vcmask 261120
  %v41 = vsel %vm39, %v27, 0
  %43 = vmatprep.subr.mxu0 0.0
  %44 = vmatpush1.msra.mxu0 %v28
  %45 = vmatprep.subr.mxu0 0.0
  %46 = vmatpush1.msra.mxu0 %v29
  %47 = vmatprep.subr.mxu0 0.0
  %48 = vmatpush1.msra.mxu0 %v30
  %49 = vmatprep.subr.mxu0 0.0
  %50 = vmatpush1.msra.mxu0 %v31
  %51 = vmatprep.subr.mxu0 0.0
  %52 = vmatpush1.msra.mxu0 0.0
  %53 = vmatprep.subr.mxu0 0.0
  %54 = vmatpush1.msra.mxu0 0.0
  %55 = vmatprep.subr.mxu0 0.0
  %56 = vmatpush1.msra.mxu0 0.0
  %57 = vmatprep.subr.mxu0 0.0
  %58 = vmatpush1.msra.mxu0 0.0
  %59 = vmatprep.subr.mxu0 0.0
  %60 = vmatpush1.msra.mxu0 0.0
  %61 = vmatprep.subr.mxu0 0.0
  %62 = vmatpush1.msra.mxu0 0.0
  %63 = vmatprep.subr.mxu0 0.0
  %64 = vmatpush1.msra.mxu0 0.0
  %65 = vmatprep.subr.mxu0 0.0
  %66 = vmatpush1.msra.mxu0 0.0
  %67 = vmatprep.subr.mxu0 0.0
  %68 = vmatpush1.msra.mxu0 0.0
  %69 = vmatprep.subr.mxu0 0.0
  %70 = vmatpush1.msra.mxu0 0.0
  %71 = vmatprep.subr.mxu0 0.0
  %72 = vmatpush1.msra.mxu0 0.0
  %73 = vmatprep.subr.mxu0 0.0
  %74 = vmatpush1.msra.mxu0 0.0
  %75 = vmatprep.subr.mxu0 0.0
  %76 = vmatpush1.msra.mxu0 0.0
  %77 = vmatprep.subr.mxu0 0.0
  %78 = vmatpush1.msra.mxu0 0.0
  %79 = vmatprep.subr.mxu0 0.0
  %80 = vmatpush1.msra.mxu0 0.0
  %81 = vmatprep.subr.mxu0 0.0
  %82 = vmatpush1.msra.mxu0 0.0
  %83 = vmatprep.subr.mxu0 0.0
  %84 = vmatpush1.msra.mxu0 0.0
  %85 = vmatprep.subr.mxu0 0.0
  %86 = vmatpush1.msra.mxu0 0.0
  %87 = vmatprep.subr.mxu0 0.0
  %88 = vmatpush1.msra.mxu0 0.0
  %89 = vmatprep.subr.mxu0 0.0
  %90 = vmatpush1.msra.mxu0 0.0
  %91 = vmatprep.subr.mxu0 0.0
  %92 = vmatpush1.msra.mxu0 0.0
  %93 = vmatprep.subr.mxu0 0.0
  %94 = vmatpush1.msra.mxu0 0.0
  %95 = vmatprep.subr.mxu0 0.0
  %96 = vmatpush1.msra.mxu0 0.0
  %97 = vmatprep.subr.mxu0 0.0
  %98 = vmatpush1.msra.mxu0 0.0
  %99 = vmatprep.subr.mxu0 0.0
  %100 = vmatpush1.msra.mxu0 0.0
  %101 = vmatprep.subr.mxu0 0.0
  %102 = vmatpush1.msra.mxu0 0.0
  %103 = vmatprep.subr.mxu0 0.0
  %104 = vmatpush1.msra.mxu0 0.0
  %105 = vmatprep.subr.mxu0 0.0
  %106 = vmatpush1.msra.mxu0 0.0
  %107 = vmatprep.mubr.f32.mxu0 0.0
  %108 = vmatmul.mubr.f32.gmra.mrb[0].mxu0 %v41
  %v109 = vpop.f32.mrb[0].mxu0
  %v110 = vadd.f32 %v37, %v109
  %v111 = vpop.f32.mrb[0].mxu0
  %112 = vdwg.mxu0
  %v113 = vtanh.pop %v110
  %v114 = vld [vmem:[%s3] sm:$0xff]
  %v115 = vld [vmem:[%s3 + $0x8] sm:$0xff]
  %v116 = vld [vmem:[%s3 + $0x10] sm:$0xff]
  %v117 = vld [vmem:[%s3 + $0x18] sm:$0xff]
  %v118 = vld [vmem:[%s4] sm:$0x1]
  %v120 = vlaneseq
  %v121 = vshrl.u32 %v120, 7
  %v122 = vsub.s32 0, %v121
  %v123 = vrot.slane %v118, %v122
  %v126 = vsel %vm39, %v113, 0
  %128 = vmatprep.subr.mxu0 0.0
  %129 = vmatpush1.msra.mxu0 %v114
  %130 = vmatprep.subr.mxu0 0.0
  %131 = vmatpush1.msra.mxu0 %v115
  %132 = vmatprep.subr.mxu0 0.0
  %133 = vmatpush1.msra.mxu0 %v116
  %134 = vmatprep.subr.mxu0 0.0
  %135 = vmatpush1.msra.mxu0 %v117
  %136 = vmatprep.subr.mxu0 0.0
  %137 = vmatpush1.msra.mxu0 0.0
  %138 = vmatprep.subr.mxu0 0.0
  %139 = vmatpush1.msra.mxu0 0.0
  %140 = vmatprep.subr.mxu0 0.0
  %141 = vmatpush1.msra.mxu0 0.0
  %142 = vmatprep.subr.mxu0 0.0
  %143 = vmatpush1.msra.mxu0 0.0
  %144 = vmatprep.subr.mxu0 0.0
  %145 = vmatpush1.msra.mxu0 0.0
  %146 = vmatprep.subr.mxu0 0.0
  %147 = vmatpush1.msra.mxu0 0.0
  %148 = vmatprep.subr.mxu0 0.0
  %149 = vmatpush1.msra.mxu0 0.0
  %150 = vmatprep.subr.mxu0 0.0
  %151 = vmatpush1.msra.mxu0 0.0
  %152 = vmatprep.subr.mxu0 0.0
  %153 = vmatpush1.msra.mxu0 0.0
  %154 = vmatprep.subr.mxu0 0.0
  %155 = vmatpush1.msra.mxu0 0.0
  %156 = vmatprep.subr.mxu0 0.0
  %157 = vmatpush1.msra.mxu0 0.0
  %158 = vmatprep.subr.mxu0 0.0
  %159 = vmatpush1.msra.mxu0 0.0
  %160 = vmatprep.subr.mxu0 0.0
  %161 = vmatpush1.msra.mxu0 0.0
  %162 = vmatprep.subr.mxu0 0.0
  %163 = vmatpush1.msra.mxu0 0.0
  %164 = vmatprep.subr.mxu0 0.0
  %165 = vmatpush1.msra.mxu0 0.0
  %166 = vmatprep.subr.mxu0 0.0
  %167 = vmatpush1.msra.mxu0 0.0
  %168 = vmatprep.subr.mxu0 0.0
  %169 = vmatpush1.msra.mxu0 0.0
  %170 = vmatprep.subr.mxu0 0.0
  %171 = vmatpush1.msra.mxu0 0.0
  %172 = vmatprep.subr.mxu0 0.0
  %173 = vmatpush1.msra.mxu0 0.0
  %174 = vmatprep.subr.mxu0 0.0
  %175 = vmatpush1.msra.mxu0 0.0
  %176 = vmatprep.subr.mxu0 0.0
  %177 = vmatpush1.msra.mxu0 0.0
  %178 = vmatprep.subr.mxu0 0.0
  %179 = vmatpush1.msra.mxu0 0.0
  %180 = vmatprep.subr.mxu0 0.0
  %181 = vmatpush1.msra.mxu0 0.0
  %182 = vmatprep.subr.mxu0 0.0
  %183 = vmatpush1.msra.mxu0 0.0
  %184 = vmatprep.subr.mxu0 0.0
  %185 = vmatpush1.msra.mxu0 0.0
  %186 = vmatprep.subr.mxu0 0.0
  %187 = vmatpush1.msra.mxu0 0.0
  %188 = vmatprep.subr.mxu0 0.0
  %189 = vmatpush1.msra.mxu0 0.0
  %190 = vmatprep.subr.mxu0 0.0
  %191 = vmatpush1.msra.mxu0 0.0
  %192 = vmatprep.mubr.f32.mxu0 0.0
  %193 = vmatmul.mubr.f32.gmra.mrb[0].mxu0 %v126
  %v194 = vpop.f32.mrb[0].mxu0
  %v195 = vadd.f32 %v123, %v194
  %v196 = vpop.f32.mrb[0].mxu0
  %197 = vdwg.mxu0
  %v198 = vtanh.pop %v195
  %v199 = vld [vmem:[%s5] sm:$0xff]
  %v200 = vld [vmem:[%s5 + $0x8] sm:$0xff]
  %s201 = sld [smem:[#allocation2]]
  %v202 = vstv %s201
  %vm203 = vcmask 130048
  %v205 = vsel %vm203, %v198, 0
  %207 = vmatprep.subr.mxu0 0.0
  %208 = vmatpush1.msra.mxu0 %v199
  %209 = vmatprep.subr.mxu0 0.0
  %210 = vmatpush1.msra.mxu0 %v200
  %211 = vmatprep.subr.mxu0 0.0
  %212 = vmatpush1.msra.mxu0 0.0
  %213 = vmatprep.subr.mxu0 0.0
  %214 = vmatpush1.msra.mxu0 0.0
  %215 = vmatprep.subr.mxu0 0.0
  %216 = vmatpush1.msra.mxu0 0.0
  %217 = vmatprep.subr.mxu0 0.0
  %218 = vmatpush1.msra.mxu0 0.0
  %219 = vmatprep.subr.mxu0 0.0
  %220 = vmatpush1.msra.mxu0 0.0
  %221 = vmatprep.subr.mxu0 0.0
  %222 = vmatpush1.msra.mxu0 0.0
  %223 = vmatprep.subr.mxu0 0.0
  %224 = vmatpush1.msra.mxu0 0.0
  %225 = vmatprep.subr.mxu0 0.0
  %226 = vmatpush1.msra.mxu0 0.0
  %227 = vmatprep.subr.mxu0 0.0
  %228 = vmatpush1.msra.mxu0 0.0
  %229 = vmatprep.subr.mxu0 0.0
  %230 = vmatpush1.msra.mxu0 0.0
  %231 = vmatprep.subr.mxu0 0.0
  %232 = vmatpush1.msra.mxu0 0.0
  %233 = vmatprep.subr.mxu0 0.0
  %234 = vmatpush1.msra.mxu0 0.0
  %235 = vmatprep.subr.mxu0 0.0
  %236 = vmatpush1.msra.mxu0 0.0
  %237 = vmatprep.subr.mxu0 0.0
  %238 = vmatpush1.msra.mxu0 0.0
  %239 = vmatprep.subr.mxu0 0.0
  %240 = vmatpush1.msra.mxu0 0.0
  %241 = vmatprep.subr.mxu0 0.0
  %242 = vmatpush1.msra.mxu0 0.0
  %243 = vmatprep.subr.mxu0 0.0
  %244 = vmatpush1.msra.mxu0 0.0
  %245 = vmatprep.subr.mxu0 0.0
  %246 = vmatpush1.msra.mxu0 0.0
  %247 = vmatprep.subr.mxu0 0.0
  %248 = vmatpush1.msra.mxu0 0.0
  %249 = vmatprep.subr.mxu0 0.0
  %250 = vmatpush1.msra.mxu0 0.0
  %251 = vmatprep.subr.mxu0 0.0
  %252 = vmatpush1.msra.mxu0 0.0
  %253 = vmatprep.subr.mxu0 0.0
  %254 = vmatpush1.msra.mxu0 0.0
  %255 = vmatprep.subr.mxu0 0.0
  %256 = vmatpush1.msra.mxu0 0.0
  %257 = vmatprep.subr.mxu0 0.0
  %258 = vmatpush1.msra.mxu0 0.0
  %259 = vmatprep.subr.mxu0 0.0
  %260 = vmatpush1.msra.mxu0 0.0
  %261 = vmatprep.subr.mxu0 0.0
  %262 = vmatpush1.msra.mxu0 0.0
  %263 = vmatprep.subr.mxu0 0.0
  %264 = vmatpush1.msra.mxu0 0.0
  %265 = vmatprep.subr.mxu0 0.0
  %266 = vmatpush1.msra.mxu0 0.0
  %267 = vmatprep.subr.mxu0 0.0
  %268 = vmatpush1.msra.mxu0 0.0
  %269 = vmatprep.subr.mxu0 0.0
  %270 = vmatpush1.msra.mxu0 0.0
  %271 = vmatprep.mubr.f32.mxu0 0.0
  %272 = vmatmul.mubr.f32.gmra.mrb[0].mxu0 %v205
  %v273 = vpop.f32.mrb[0].mxu0
  %v274 = vadd.f32 %v202, %v273
  %v275 = vpop.f32.mrb[0].mxu0
  %276 = vdwg.mxu0
  %v277 = vsub.f32 0.0, %v274
  %v278 = vmul.f32 %v277, 1.442695
  %v279 = vpow.pop %v278
  %v280 = vadd.f32 %v279, 1.0
  %v281 = vrcp.pop %v280
  %v282 = vmul.f32 1.0, %v281
  %v283 = vmul.f32 %v274, 1.442695
  %v284 = vpow.pop %v283
  %v285 = vadd.f32 %v284, 1.0
  %v286 = vrcp.pop %v285
  %v287 = vmul.f32 1.0, %v286
  %v288 = vlaneseq
  %v289 = vand.u32 %v288, 127
  %vm290 = vcmp.eq.s32.totalorder %v289, 0
  %292 = vset.pattern.permute.xlu0 0
  %293 = vperm.xlu0 %292, %v287
  %v294 = vpop.permute.xlu0 %293
  %297 = vset.pattern.permute.xlu0 0
  %298 = vperm.xlu0 %297, %v282
  %v299 = vpop.permute.xlu0 %298
  %v301 = vsel %vm290, %v294, %v299
  %vm302 = vcmask 15360
  %303 = vst.msk [vmem:[%s7] sm:$0xff] %vm302, %v301
  // Predicated region
  $region30: #{tpu_custom_call.1} parent=0 // pred_check
    _
  $region31: #{tpu_custom_call.1} parent=0 // pred_check_branch
    %305 = sbr.rel (0) target = $region33
  $region32: #{tpu_custom_call.1} parent=0 // pred_region
    _
  $region33: #{tpu_custom_call.1} parent=0 // pred_fallthru
    _
  // Predicated region
  $region34: #{tpu_custom_call.1} parent=0 // pred_check
    _
  $region35: #{tpu_custom_call.1} parent=0 // pred_check_branch
    %307 = sbr.rel (0) target = $region37
  $region36: #{tpu_custom_call.1} parent=0 // pred_region
    _
  $region37: #{tpu_custom_call.1} parent=0 // pred_fallthru
    _

</llo_original>
